<compile_context>
chip_gen: v7x
topology: tpu7x:2x2x1
jax: 0.10.0
libtpu: 0.0.40
codegen_flags: <defaults>
</compile_context>

<pallas_src>
import jax
import jax.numpy as jnp
from jax import lax
from jax.experimental import pallas as pl
from jax.experimental.pallas import tpu as pltpu

TAU = 2.0
V_TH = 1.0
BN_EPS = 1e-5


def _round_up(x, m):
    return (x + m - 1) // m * m


def _snn_encoder_kernel(p_ref, w_ref, thr_ref, o_ref):
    """Fused conv(im2col) + BN + LIF threshold.

    p_ref:   (TM, G*K)     bf16 im2col patches, G output pixels per row
    w_ref:   (G*K, G*Cout) block-diagonal BN-folded conv weights (resident)
    thr_ref: (1, G*Cout)   per-channel spike thresholds (f32)
    o_ref:   (TM, G*Cout)  f32 spikes (lane-dense: G*Cout == 128)
    """
    acc = jnp.dot(p_ref[...], w_ref[...], preferred_element_type=jnp.float32)
    o_ref[...] = (acc >= thr_ref[...]).astype(o_ref.dtype)


def snn_encoder_forward(x_nchw, w_oihw, bias, gamma, beta, run_mean, run_var,
                        *, eps=BN_EPS, tau=TAU, v_th=V_TH,
                        compute_dtype=jnp.bfloat16, target_block_rows=512):
    """Pallas forward for SNNEncoder. Input NCHW, output NCHW float32 spikes."""
    N, Cin, H, W = x_nchw.shape
    Cout = w_oihw.shape[0]
    K = 9 * Cin
    f32 = jnp.float32

    # ---- fold Conv bias + BatchNorm + LIF threshold (plain JAX glue) ----
    # spike = (((conv_w(x)+bias) - mean)*scale + beta) / tau >= v_th
    #       =   conv_{w*scale}(x) >= tau*v_th - beta - (bias - mean)*scale
    scale = gamma.astype(f32) / jnp.sqrt(run_var.astype(f32) + eps)            # (Cout,)
    w_mat = jnp.transpose(w_oihw.astype(f32), (2, 3, 1, 0)).reshape(K, Cout)   # (9*Cin, Cout)
    w_mat = w_mat * scale[None, :]
    thr = tau * v_th - beta.astype(f32) - (bias.astype(f32) - run_mean.astype(f32)) * scale

    # ---- pack G output pixels per matmul row so the output is 128 lanes wide ----
    G = 128 // Cout if (Cout <= 128 and 128 % Cout == 0) else 1
    w_big = jnp.kron(jnp.eye(G, dtype=f32), w_mat).astype(compute_dtype)       # (G*K, G*Cout)
    thr_big = jnp.tile(thr, G).reshape(1, G * Cout).astype(f32)

    # ---- im2col in NHWC (channels -> lanes): 9 shifted slices, one K=9*Cin dim ----
    # TODO(synk): keep the surrounding model NHWC end-to-end to drop these transposes.
    x = jnp.transpose(x_nchw, (0, 2, 3, 1)).astype(compute_dtype)              # NHWC
    x_pad = jnp.pad(x, ((0, 0), (1, 1), (1, 1), (0, 0)))
    patches = jnp.concatenate(
        [x_pad[:, kh:kh + H, kw:kw + W, :] for kh in range(3) for kw in range(3)],
        axis=-1).reshape(-1, K)                                                # (M, 9*Cin)

    M = N * H * W
    Mg = _round_up(M, G)
    if Mg != M:
        patches = jnp.pad(patches, ((0, Mg - M), (0, 0)))
    m_rows = Mg // G
    patches = patches.reshape(m_rows, G * K)      # free view: same row-major order

    # ---- block the M dim: big blocks, but >=2 grid steps (megacore / v7x 2 TCs) ----
    if m_rows > 8:
        n_blocks = max(2, pl.cdiv(m_rows, target_block_rows))
    else:
        n_blocks = 1
    block_rows = _round_up(pl.cdiv(m_rows, n_blocks), 8)
    rows_pad = _round_up(m_rows, block_rows)
    if rows_pad != m_rows:
        patches = jnp.pad(patches, ((0, rows_pad - m_rows), (0, 0)))
    grid = (rows_pad // block_rows,)

    out2d = pl.pallas_call(
        _snn_encoder_kernel,
        out_shape=jax.ShapeDtypeStruct((rows_pad, G * Cout), jnp.float32),
        grid_spec=pltpu.PrefetchScalarGridSpec(
            num_scalar_prefetch=0,
            grid=grid,
            in_specs=[
                pl.BlockSpec((block_rows, G * K), lambda i: (i, 0)),
                pl.BlockSpec((G * K, G * Cout), lambda i: (0, 0)),   # resident weights
                pl.BlockSpec((1, G * Cout), lambda i: (0, 0)),       # resident thresholds
            ],
            out_specs=pl.BlockSpec((block_rows, G * Cout), lambda i: (i, 0)),
        ),
        compiler_params=pltpu.CompilerParams(
            dimension_semantics=("parallel",),
        ),
    )(patches, w_big, thr_big)

    # un-pack: flat order is already row-major NHWC, so this is just a reshape.
    out = out2d.reshape(-1, Cout)[:M].reshape(N, H, W, Cout)
    return jnp.transpose(out, (0, 3, 1, 2))                                    # back to NCHW


def _reference_forward(x_nchw, w_oihw, bias, gamma, beta, run_mean, run_var,
                       *, eps=BN_EPS, tau=TAU, v_th=V_TH):
    """Pure-JAX f32 reference (same semantics). Returns (membrane v, spikes)."""
    z = lax.conv_general_dilated(
        x_nchw, w_oihw, window_strides=(1, 1), padding="SAME",
        dimension_numbers=("NCHW", "OIHW", "NCHW"),
    ) + bias[None, :, None, None]
    inv_std = 1.0 / jnp.sqrt(run_var + eps)
    y = (z - run_mean[None, :, None, None]) * (gamma * inv_std)[None, :, None, None] \
        + beta[None, :, None, None]
    v = y / tau
    return v, (v >= v_th).astype(jnp.float32)


if __name__ == "__main__":
    # Small deterministic setup: N=2, Cin=4, H=W=16, Cout=32.
    N, Cin, H, W, Cout = 2, 4, 16, 16, 32
    key = jax.random.PRNGKey(0)
    kx, kw, kb, kg, kbe, km, kv = jax.random.split(key, 7)

    x = jax.random.normal(kx, (N, Cin, H, W), dtype=jnp.float32) * 2.0
    w = jax.random.normal(kw, (Cout, Cin, 3, 3), dtype=jnp.float32) * 0.2
    bias = jax.random.normal(kb, (Cout,), dtype=jnp.float32) * 0.1
    gamma = 1.0 + 0.1 * jax.random.normal(kg, (Cout,), dtype=jnp.float32)
    beta = 0.1 * jax.random.normal(kbe, (Cout,), dtype=jnp.float32)
    run_mean = 0.1 * jax.random.normal(km, (Cout,), dtype=jnp.float32)
    run_var = jnp.abs(1.0 + 0.1 * jax.random.normal(kv, (Cout,), dtype=jnp.float32))

    out = snn_encoder_forward(x, w, bias, gamma, beta, run_mean, run_var)
    out = jax.block_until_ready(out)
    assert out.shape == (N, Cout, H, W)
    assert out.dtype == jnp.float32

    v_ref, spikes_ref = _reference_forward(x, w, bias, gamma, beta, run_mean, run_var)
    # Spikes are a hard threshold: bf16-rounded matmul inputs (and a different
    # reduction order) can flip pixels whose membrane potential sits within
    # rounding error of v_th. Require exact agreement away from the threshold
    # plus a high overall agreement rate.
    clear = jnp.abs(v_ref - V_TH) > 0.05
    assert bool(jnp.all(out[clear] == spikes_ref[clear])), \
        "Pallas spikes mismatch reference away from threshold"
    agree = float(jnp.mean((out == spikes_ref).astype(jnp.float32)))
    assert agree > 0.98, f"spike agreement too low: {agree}"

    print("KERNEL_OK")
</pallas_src>

<mosaic_0001>
module attributes {stable_mosaic.version = 11 : i64} {
  func.func @_snn_encoder_kernel(%arg0: i32, %arg1: memref<64x144xbf16, #tpu.memory_space<vmem>>, %arg2: memref<144x128xbf16, #tpu.memory_space<vmem>>, %arg3: memref<1x128xf32, #tpu.memory_space<vmem>>, %arg4: memref<64x128xf32, #tpu.memory_space<vmem>>) attributes {dimension_semantics = [#tpu.dimension_semantics<parallel>], iteration_bounds = array<i64: 2>, scalar_prefetch = 0 : i64, scratch_operands = 0 : i64, tpu.core_type = #tpu.core_type<tc>, window_params = [{transform_indices = @transform_0, window_bounds = array<i64: 64, 144>}, {pipeline_mode = #tpu.pipeline_mode<synchronous>, transform_indices = @transform_1, window_bounds = array<i64: 144, 128>}, {pipeline_mode = #tpu.pipeline_mode<synchronous>, transform_indices = @transform_2, window_bounds = array<i64: 1, 128>}, {transform_indices = @transform_3, window_bounds = array<i64: 64, 128>}]} {
    %c0 = arith.constant 0 : index
    %c0_0 = arith.constant 0 : index
    %0 = vector.load %arg1[%c0, %c0_0] : memref<64x144xbf16, #tpu.memory_space<vmem>>, vector<64x144xbf16>
    %c0_1 = arith.constant 0 : index
    %c0_2 = arith.constant 0 : index
    %1 = vector.load %arg2[%c0_1, %c0_2] : memref<144x128xbf16, #tpu.memory_space<vmem>>, vector<144x128xbf16>
    %cst = arith.constant dense<0.000000e+00> : vector<64x128xf32>
    %2 = tpu.matmul %0, %1, %cst {dimension_numbers = #tpu.dot_dimension_numbers<[1], [0], [0], [1], [0, 0, 1, 1], [], []>} : vector<64x144xbf16>, vector<144x128xbf16>, vector<64x128xf32> -> vector<64x128xf32>
    %c0_3 = arith.constant 0 : index
    %c0_4 = arith.constant 0 : index
    %3 = vector.load %arg3[%c0_3, %c0_4] : memref<1x128xf32, #tpu.memory_space<vmem>>, vector<1x128xf32>
    %4 = vector.broadcast %3 : vector<1x128xf32> to vector<64x128xf32>
    %5 = arith.cmpf oge, %2, %4 : vector<64x128xf32>
    %6 = arith.extui %5 : vector<64x128xi1> to vector<64x128xi32>
    %7 = arith.sitofp %6 : vector<64x128xi32> to vector<64x128xf32>
    %c0_5 = arith.constant 0 : index
    %c0_6 = arith.constant 0 : index
    %8 = vector.load %arg4[%c0_5, %c0_6] : memref<64x128xf32, #tpu.memory_space<vmem>>, vector<64x128xf32>
    tpu.vector_store %arg4[%c0_5, %c0_6], %7 {strides = array<i32>} : memref<64x128xf32, #tpu.memory_space<vmem>>, vector<64x128xf32>,
    return
  }
  func.func @transform_0(%arg0: i32) -> (i32, i32) {
    %c0_i32 = arith.constant 0 : i32
    %c0_i32_0 = arith.constant 0 : i32
    return %arg0, %c0_i32 : i32, i32
  }
  func.func @transform_1(%arg0: i32) -> (i32, i32) {
    %c0_i32 = arith.constant 0 : i32
    %c0_i32_0 = arith.constant 0 : i32
    %c0_i32_1 = arith.constant 0 : i32
    return %c0_i32, %c0_i32_0 : i32, i32
  }
  func.func @transform_2(%arg0: i32) -> (i32, i32) {
    %c0_i32 = arith.constant 0 : i32
    %c0_i32_0 = arith.constant 0 : i32
    %c0_i32_1 = arith.constant 0 : i32
    return %c0_i32, %c0_i32_0 : i32, i32
  }
  func.func @transform_3(%arg0: i32) -> (i32, i32) {
    %c0_i32 = arith.constant 0 : i32
    %c0_i32_0 = arith.constant 0 : i32
    return %arg0, %c0_i32 : i32, i32
  }
}

</mosaic_0001>

<llo_original>
// kernel: tpu_custom_call.1
$region0: #{tpu_custom_call.1}
  #allocation0 [shape = 'u32[]', space=smem, size = 0x4, offset = 0x4, fixed_abs, tag = 'smem constant byte address 0x4 - core index']
  #allocation1 [shape = 'u32[144,128]{1,0:T(1,128)}', space=vmem, size = 0x12000, scoped, tag = 'internal scratch']
  %s0 = inlined_call_operand.vmem [shape: bf16[128,144], index: 0, kind: input, shape index: {}]
  %s1 = inlined_call_operand.vmem [shape: bf16[144,128], index: 1, kind: input, shape index: {}]
  %s2 = inlined_call_operand.vmem [shape: f32[1,128], index: 2, kind: input, shape index: {}]
  %s3 = inlined_call_operand.hbm [shape: f32[128,128], index: 3, kind: output, shape index: {}]
  %s4 = sld [smem:[#allocation0]]
  $region45: #{tpu_custom_call.1} parent=0
    _
  %s6 = ssub.s32 1, %s4
  %s7 = scalar_select 0, %s6, %s4
  $region1: #{tpu_custom_call.1} parent=0
    #allocation2 [shape = 'u8[65536]{0}', space=vmem, size = 0x10000, scoped, tag = 'output window, operand 0']
    #allocation3 [shape = 's32[2]{0}', space=sflag, size = 0x8, scoped, tag = 'scoped memory for tpu_custom_call.1']
    %8 = vsyncpa [#allocation3], 0
    %s9 = scalar_lea.sflag [#allocation3], 1
    %10 = vsyncpa %s9, 0
    loop: start=0, step=1, limit=4
    $region2: #{tpu_custom_call.1} parent=1 // loop_pre_header
      _
    $region3: #{tpu_custom_call.1} parent=1 // loop_header
      %s12 = sphi 0, %s16
      %p13 = scmp.ge.s32.totalorder %s12, 4
      %s22 = sphi 0, %s24
      %s25 = sphi 0, %s22
      %s26 = sphi 0, %s25
      %s42 = sphi 0, %s26
      %s46 = sphi 0, %s46
      %s48 = sphi 0, %s46
      %s49 = sphi 0, %s48
      %s63 = sphi 0, %s49
      %s67 = sphi 0, %s67
      %s69 = sphi 0, %s67
      %s70 = sphi 0, %s69
      %s84 = sphi 0, %s70
      %s90 = sphi 0, %s92
      %s93 = sphi 0, %s90
      %s94 = sphi 0, %s93
      %s110 = sphi 0, %s94
    $region4: #{tpu_custom_call.1} parent=1 // loop_header_branch
      %15 = sbr.rel (%p13) target = $region8
    $region5: #{tpu_custom_call.1} parent=1 // loop_body
      %s17 = ssub.s32 %s12, 1
      %s18 = ssub.s32 %s12, 2
      %s19 = sadd.s32 %s12, 1
      %s20 = ssub.s32 %s12, %s19
      %p21 = scmp.eq.s32.totalorder %s20, 0
      %s23 = sadd.s32 %s22, 1
      %s24 = scalar_select %p21, %s22, %s23
      %p27 = pneg %p21
      %p28 = scmp.eq.s32.totalorder %s12, 1
      %p29 = por %p27, %p28
      %p30 = scmp.ne.s32.totalorder %s22, %s25
      %p31 = scmp.eq.s32.totalorder %s12, 0
      %p32 = por %p30, %p31
      %p33 = scmp.ne.s32.totalorder %s22, %s25
      %p34 = scmp.eq.s32.totalorder %s17, 1
      %p35 = por %p33, %p34
      %p36 = scmp.ne.s32.totalorder %s25, %s26
      %p37 = scmp.eq.s32.totalorder %s17, 0
      %p38 = por %p36, %p37
      %p39 = scmp.ne.s32.totalorder %s25, %s26
      %p40 = scmp.eq.s32.totalorder %s18, 1
      %p41 = por %p39, %p40
      %p43 = scmp.ne.s32.totalorder %s26, %s42
      %p44 = scmp.eq.s32.totalorder %s18, 0
      %p45 = por %p43, %p44
      %s47 = sadd.s32 %s46, 1
      %p50 = scmp.eq.s32.totalorder %s12, 1
      %p51 = scmp.ne.s32.totalorder %s46, %s48
      %p52 = scmp.eq.s32.totalorder %s12, 0
      %p53 = por %p51, %p52
      %p54 = scmp.ne.s32.totalorder %s46, %s48
      %p55 = scmp.eq.s32.totalorder %s17, 1
      %p56 = por %p54, %p55
      %p57 = scmp.ne.s32.totalorder %s48, %s49
      %p58 = scmp.eq.s32.totalorder %s17, 0
      %p59 = por %p57, %p58
      %p60 = scmp.ne.s32.totalorder %s48, %s49
      %p61 = scmp.eq.s32.totalorder %s18, 1
      %p62 = por %p60, %p61
      %p64 = scmp.ne.s32.totalorder %s49, %s63
      %p65 = scmp.eq.s32.totalorder %s18, 0
      %p66 = por %p64, %p65
      %s68 = sadd.s32 %s67, 1
      %p71 = scmp.eq.s32.totalorder %s12, 1
      %p72 = scmp.ne.s32.totalorder %s67, %s69
      %p73 = scmp.eq.s32.totalorder %s12, 0
      %p74 = por %p72, %p73
      %p75 = scmp.ne.s32.totalorder %s67, %s69
      %p76 = scmp.eq.s32.totalorder %s17, 1
      %p77 = por %p75, %p76
      %p78 = scmp.ne.s32.totalorder %s69, %s70
      %p79 = scmp.eq.s32.totalorder %s17, 0
      %p80 = por %p78, %p79
      %p81 = scmp.ne.s32.totalorder %s69, %s70
      %p82 = scmp.eq.s32.totalorder %s18, 1
      %p83 = por %p81, %p82
      %p85 = scmp.ne.s32.totalorder %s70, %s84
      %p86 = scmp.eq.s32.totalorder %s18, 0
      %p87 = por %p85, %p86
      %s88 = ssub.s32 %s12, %s19
      %p89 = scmp.eq.s32.totalorder %s88, 0
      %s91 = sadd.s32 %s90, 1
      %s92 = scalar_select %p89, %s90, %s91
      %p95 = pneg %p89
      %p96 = scmp.eq.s32.totalorder %s12, 1
      %p97 = por %p95, %p96
      %p98 = scmp.ne.s32.totalorder %s90, %s93
      %p99 = scmp.eq.s32.totalorder %s12, 0
      %p100 = por %p98, %p99
      %p101 = scmp.ne.s32.totalorder %s90, %s93
      %p102 = scmp.eq.s32.totalorder %s17, 1
      %p103 = por %p101, %p102
      %p104 = scmp.ne.s32.totalorder %s93, %s94
      %p105 = scmp.eq.s32.totalorder %s17, 0
      %p106 = por %p104, %p105
      %p107 = scmp.ne.s32.totalorder %s93, %s94
      %p108 = scmp.eq.s32.totalorder %s18, 1
      %p109 = por %p107, %p108
      %p111 = scmp.ne.s32.totalorder %s94, %s110
      %p112 = scmp.eq.s32.totalorder %s18, 0
      %p113 = por %p111, %p112
      %p114 = scmp.le.s32.totalorder 1, %s12
      %p115 = scmp.lt.s32.totalorder %s12, 3
      %p116 = pnand %p114, %p115
      %p117 = pneg %p116
      // Predicated region
      $region9: #{tpu_custom_call.1} parent=5 // pred_check
        _
      $region10: #{tpu_custom_call.1} parent=5 // pred_check_branch
        %119 = sbr.rel (%p116) target = $region12
      $region11: #{tpu_custom_call.1} parent=5 // pred_region
        %s120 = ssub.s32 %s12, 1
        // Predicated region
        $region13: #{tpu_custom_call.1} parent=11 // pred_check
          %p121 = pneg %p59
        $region14: #{tpu_custom_call.1} parent=11 // pred_check_branch
          %123 = sbr.rel (%p121) target = $region16
        $region15: #{tpu_custom_call.1} parent=11 // pred_region
          _
        $region16: #{tpu_custom_call.1} parent=11 // pred_fallthru
          _
        // Predicated region
        $region17: #{tpu_custom_call.1} parent=11 // pred_check
          %p124 = pneg %p80
        $region18: #{tpu_custom_call.1} parent=11 // pred_check_branch
          %126 = sbr.rel (%p124) target = $region20
        $region19: #{tpu_custom_call.1} parent=11 // pred_region
          _
        $region20: #{tpu_custom_call.1} parent=11 // pred_fallthru
          _
      $region12: #{tpu_custom_call.1} parent=5 // pred_fallthru
        _
      %p127 = scmp.lt.s32.totalorder %s12, 2
      // Predicated region
      $region21: #{tpu_custom_call.1} parent=5 // pred_check
        %p128 = pneg %p127
      $region22: #{tpu_custom_call.1} parent=5 // pred_check_branch
        %130 = sbr.rel (%p128) target = $region24
      $region23: #{tpu_custom_call.1} parent=5 // pred_region
        // Predicated region
        $region25: #{tpu_custom_call.1} parent=23 // pred_check
          %p131 = pneg %p32
        $region26: #{tpu_custom_call.1} parent=23 // pred_check_branch
          %133 = sbr.rel (%p131) target = $region28
        $region27: #{tpu_custom_call.1} parent=23 // pred_region
          %s134 = smul.u32 8, %s12
          %p135 = scmp.lt.s32.totalorder %s134, 15
          %s136 = scalar_select %p135, %s134, 15
          %s137 = smul.addr %s136, 2
          %s138 = smul.addr %s137, 4
          %s139 = scalar_lea.vmem %s0, %s138
          %s140 = smul.u32 8, %s12
        $region28: #{tpu_custom_call.1} parent=23 // pred_fallthru
          _
      $region24: #{tpu_custom_call.1} parent=5 // pred_fallthru
        _
      %p141 = scmp.le.s32.totalorder 1, %s12
      %p142 = scmp.lt.s32.totalorder %s12, 3
      %p143 = pnand %p141, %p142
      %p144 = pneg %p143
      // Predicated region
      $region29: #{tpu_custom_call.1} parent=5 // pred_check
        _
      $region30: #{tpu_custom_call.1} parent=5 // pred_check_branch
        %146 = sbr.rel (%p143) target = $region32
      $region31: #{tpu_custom_call.1} parent=5 // pred_region
        %s147 = ssub.s32 %s12, 1
        %s148 = smul.u32 8, %s17
        %p149 = scmp.lt.s32.totalorder %s148, 15
        %s150 = scalar_select %p149, %s148, 15
        %s151 = smul.addr %s150, 2
        %s152 = smul.addr %s151, 4
        %s153 = scalar_lea.vmem %s0, %s152
        %p154 = pneg %p38
        %p155 = pneg %p35
        %p156 = pneg %p59
        %p157 = pneg %p56
        %p158 = pneg %p80
        %p159 = pneg %p77
        %p160 = pneg %p106
        %p161 = pneg %p103
        %s162 = sand.u32 %s93, 1
        %s163 = scalar_lea.sflag [#allocation3], %s162
        %s164 = sand.u32 %s93, 1
        %s165 = smul.addr %s164, 64
        %s166 = scalar_lea.vmem [#allocation2], %s165
        %s167 = smul.u32 8, %s17
        %p168 = scmp.lt.s32.totalorder %s167, 15
        %s169 = scalar_select %p168, %s167, 15
        %s170 = smul.addr %s169, 2
        %s171 = smul.addr %s170, 4
        %s172 = scalar_lea.vmem %s0, %s171
        %s173 = smul.u32 8, %s17
        %s174 = smul.u32 8, %s17
        %v176 = vld [vmem:[%s172] sm:$0xff]
        %v177 = vld [vmem:[%s172 + $0x8] sm:$0xff]
        %v178 = vld [vmem:[%s172 + $0x10] sm:$0xff]
        %v179 = vld [vmem:[%s172 + $0x18] sm:$0xff]
        %v180 = vld [vmem:[%s172 + $0x20] sm:$0xff]
        %v181 = vld [vmem:[%s172 + $0x28] sm:$0xff]
        %v182 = vld [vmem:[%s172 + $0x30] sm:$0xff]
        %v183 = vld [vmem:[%s172 + $0x38] sm:$0xff]
        %v184 = vld [vmem:[%s1] sm:$0xf]
        %v185 = vld [vmem:[%s1 + $0x4] sm:$0xf]
        %v186 = vld [vmem:[%s1 + $0x8] sm:$0xf]
        %v187 = vld [vmem:[%s1 + $0xc] sm:$0xf]
        %v188 = vld [vmem:[%s1 + $0x10] sm:$0xf]
        %v189 = vld [vmem:[%s1 + $0x14] sm:$0xf]
        %v190 = vld [vmem:[%s1 + $0x18] sm:$0xf]
        %v191 = vld [vmem:[%s1 + $0x1c] sm:$0xf]
        %v192 = vld [vmem:[%s1 + $0x20] sm:$0xf]
        %v193 = vld [vmem:[%s1 + $0x24] sm:$0xf]
        %v194 = vld [vmem:[%s1 + $0x28] sm:$0xf]
        %v195 = vld [vmem:[%s1 + $0x2c] sm:$0xf]
        %v196 = vld [vmem:[%s1 + $0x30] sm:$0xf]
        %v197 = vld [vmem:[%s1 + $0x34] sm:$0xf]
        %v198 = vld [vmem:[%s1 + $0x38] sm:$0xf]
        %v199 = vld [vmem:[%s1 + $0x3c] sm:$0xf]
        %v200 = vld [vmem:[%s1 + $0x40] sm:$0xf]
        %v201 = vld [vmem:[%s1 + $0x44] sm:$0xf]
        %v210 = vunpack.c.l.b16 %v176
        %v211 = vunpack.c.h.b16 %v176
        %v212 = vunpack.c.l.b16 %v177
        %v213 = vunpack.c.h.b16 %v177
        %v214 = vunpack.c.l.b16 %v178
        %v215 = vunpack.c.h.b16 %v178
        %v216 = vunpack.c.l.b16 %v179
        %v217 = vunpack.c.h.b16 %v179
        %v218 = vunpack.c.l.b16 %v180
        %v219 = vunpack.c.h.b16 %v180
        %v220 = vunpack.c.l.b16 %v181
        %v221 = vunpack.c.h.b16 %v181
        %v222 = vunpack.c.l.b16 %v182
        %v223 = vunpack.c.h.b16 %v182
        %v224 = vunpack.c.l.b16 %v183
        %v225 = vunpack.c.h.b16 %v183
        %v226 = vpack.c.b16 %v212, %v210
        %v227 = vpack.c.b16 %v213, %v211
        %v228 = vpack.c.b16 %v216, %v214
        %v229 = vpack.c.b16 %v217, %v215
        %v230 = vpack.c.b16 %v220, %v218
        %v231 = vpack.c.b16 %v221, %v219
        %v232 = vpack.c.b16 %v224, %v222
        %v233 = vpack.c.b16 %v225, %v223
        %v256 = vunpack.c.l.b16 %v184
        %v257 = vunpack.c.l.b16 %v185
        %v258 = vunpack.c.l.b16 %v186
        %v259 = vunpack.c.l.b16 %v187
        %v260 = vunpack.c.l.b16 %v188
        %v261 = vunpack.c.l.b16 %v189
        %v262 = vunpack.c.l.b16 %v190
        %v263 = vunpack.c.l.b16 %v191
        %v264 = vunpack.c.l.b16 %v192
        %v265 = vunpack.c.l.b16 %v193
        %v266 = vunpack.c.l.b16 %v194
        %v267 = vunpack.c.l.b16 %v195
        %v268 = vunpack.c.l.b16 %v196
        %v269 = vunpack.c.l.b16 %v197
        %v270 = vunpack.c.l.b16 %v198
        %v271 = vunpack.c.l.b16 %v199
        %v272 = vunpack.c.l.b16 %v200
        %v273 = vunpack.c.l.b16 %v201
        %v274 = vpack.c.b16 %v257, %v256
        %v275 = vpack.c.b16 %v259, %v258
        %v276 = vpack.c.b16 %v261, %v260
        %v277 = vpack.c.b16 %v263, %v262
        %v278 = vpack.c.b16 %v265, %v264
        %v279 = vpack.c.b16 %v267, %v266
        %v280 = vpack.c.b16 %v269, %v268
        %v281 = vpack.c.b16 %v271, %v270
        %v282 = vpack.c.b16 %v273, %v272
        %vm292 = vcmask 130048
        %v294 = vsel %vm292, %v227, 0
        %v297 = vsel %vm292, %v229, 0
        %v300 = vsel %vm292, %v231, 0
        %v303 = vsel %vm292, %v233, 0
        %305 = vmatprep.subr.bf16.mxu0 0
        %306 = vmatpush1.bf16.msra.mxu0 %v274
        %307 = vmatprep.subr.bf16.mxu0 0
        %308 = vmatpush1.bf16.msra.mxu0 %v275
        %309 = vmatprep.subr.bf16.mxu0 0
        %310 = vmatpush1.bf16.msra.mxu0 %v276
        %311 = vmatprep.subr.bf16.mxu0 0
        %312 = vmatpush1.bf16.msra.mxu0 %v277
        %313 = vmatprep.subr.bf16.mxu0 0
        %314 = vmatpush1.bf16.msra.mxu0 %v278
        %315 = vmatprep.subr.bf16.mxu0 0
        %316 = vmatpush1.bf16.msra.mxu0 %v279
        %317 = vmatprep.subr.bf16.mxu0 0
        %318 = vmatpush1.bf16.msra.mxu0 %v280
        %319 = vmatprep.subr.bf16.mxu0 0
        %320 = vmatpush1.bf16.msra.mxu0 %v281
        %321 = vmatprep.subr.bf16.mxu0 0
        %322 = vmatpush1.bf16.msra.mxu0 %v282
        %323 = vmatprep.subr.bf16.mxu0 0
        %324 = vmatpush1.bf16.msra.mxu0 0
        %325 = vmatprep.subr.bf16.mxu0 0
        %326 = vmatpush1.bf16.msra.mxu0 0
        %327 = vmatprep.subr.bf16.mxu0 0
        %328 = vmatpush1.bf16.msra.mxu0 0
        %329 = vmatprep.subr.bf16.mxu0 0
        %330 = vmatpush1.bf16.msra.mxu0 0
        %331 = vmatprep.subr.bf16.mxu0 0
        %332 = vmatpush1.bf16.msra.mxu0 0
        %333 = vmatprep.subr.bf16.mxu0 0
        %334 = vmatpush1.bf16.msra.mxu0 0
        %335 = vmatprep.subr.bf16.mxu0 0
        %336 = vmatpush1.bf16.msra.mxu0 0
        %337 = vmatprep.mubr.bf16.mxu0 %v294
        %338 = vmatmul.mubr.bf16.gmra.mrb[0].mxu0 %v226
        %v339 = vpop.f32.mrb[0].mxu0
        %v340 = vadd.f32 0.0, %v339
        %v341 = vpop.f32.mrb[0].mxu0
        %v342 = vpop.f32.mrb[0].mxu0
        %v343 = vadd.f32 0.0, %v342
        %v344 = vpop.f32.mrb[0].mxu0
        %345 = vmatprep.mubr.bf16.mxu0 %v297
        %346 = vmatmul.mubr.bf16.gmra.mrb[0].mxu0 %v228
        %v347 = vpop.f32.mrb[0].mxu0
        %v348 = vadd.f32 0.0, %v347
        %v349 = vpop.f32.mrb[0].mxu0
        %v350 = vpop.f32.mrb[0].mxu0
        %v351 = vadd.f32 0.0, %v350
        %v352 = vpop.f32.mrb[0].mxu0
        %353 = vmatprep.mubr.bf16.mxu0 %v300
        %354 = vmatmul.mubr.bf16.gmra.mrb[0].mxu0 %v230
        %v355 = vpop.f32.mrb[0].mxu0
        %v356 = vadd.f32 0.0, %v355
        %v357 = vpop.f32.mrb[0].mxu0
        %v358 = vpop.f32.mrb[0].mxu0
        %v359 = vadd.f32 0.0, %v358
        %v360 = vpop.f32.mrb[0].mxu0
        %361 = vmatprep.mubr.bf16.mxu0 %v303
        %362 = vmatmul.mubr.bf16.gmra.mrb[0].mxu0 %v232
        %v363 = vpop.f32.mrb[0].mxu0
        %v364 = vadd.f32 0.0, %v363
        %v365 = vpop.f32.mrb[0].mxu0
        %v366 = vpop.f32.mrb[0].mxu0
        %v367 = vadd.f32 0.0, %v366
        %v368 = vpop.f32.mrb[0].mxu0
        %369 = vdwg.mxu0
        %v370 = vld [vmem:[%s2] sm:$0x1]
        %v372 = vlaneseq
        %v373 = vshrl.u32 %v372, 7
        %v374 = vsub.s32 0, %v373
        %v375 = vrot.slane %v370, %v374
        %vm377 = vcmp.ge.f32.partialorder %v340, %v375
        %vm378 = vcmp.ge.f32.partialorder %v343, %v375
        %vm379 = vcmp.ge.f32.partialorder %v348, %v375
        %vm380 = vcmp.ge.f32.partialorder %v351, %v375
        %vm381 = vcmp.ge.f32.partialorder %v356, %v375
        %vm382 = vcmp.ge.f32.partialorder %v359, %v375
        %vm383 = vcmp.ge.f32.partialorder %v364, %v375
        %vm384 = vcmp.ge.f32.partialorder %v367, %v375
        %v385 = vsel %vm377, 1, 0
        %v386 = vsel %vm378, 1, 0
        %v387 = vsel %vm379, 1, 0
        %v388 = vsel %vm380, 1, 0
        %v389 = vsel %vm381, 1, 0
        %v390 = vsel %vm382, 1, 0
        %v391 = vsel %vm383, 1, 0
        %v392 = vsel %vm384, 1, 0
        %v393 = vcvt.s32.f32 %v385
        %v394 = vcvt.s32.f32 %v386
        %v395 = vcvt.s32.f32 %v387
        %v396 = vcvt.s32.f32 %v388
        %v397 = vcvt.s32.f32 %v389
        %v398 = vcvt.s32.f32 %v390
        %v399 = vcvt.s32.f32 %v391
        %v400 = vcvt.s32.f32 %v392
        %401 = vst [vmem:[%s166] sm:$0xff] %v393
        %402 = vst [vmem:[%s166 + $0x8] sm:$0xff] %v394
        %403 = vst [vmem:[%s166 + $0x10] sm:$0xff] %v395
        %404 = vst [vmem:[%s166 + $0x18] sm:$0xff] %v396
        %405 = vst [vmem:[%s166 + $0x20] sm:$0xff] %v397
        %406 = vst [vmem:[%s166 + $0x28] sm:$0xff] %v398
        %407 = vst [vmem:[%s166 + $0x30] sm:$0xff] %v399
        %408 = vst [vmem:[%s166 + $0x38] sm:$0xff] %v400
        %s409 = sand.u32 %s93, 1
        %s410 = scalar_lea.sflag [#allocation3], %s409
        %s411 = sand.u32 %s93, 1
        %s412 = smul.addr %s411, 64
        %s413 = scalar_lea.vmem [#allocation2], %s412
        // Predicated region
        $region33: #{tpu_custom_call.1} parent=31 // pred_check
          %p414 = pneg %p103
        $region34: #{tpu_custom_call.1} parent=31 // pred_check_branch
          %416 = sbr.rel (%p414) target = $region36
        $region35: #{tpu_custom_call.1} parent=31 // pred_region
          %s417 = smul.u32 8, %s17
          %s419 = ssub.s32 1024, 1024
          %420 = vsyncadd %s410, %s419
          %s421 = smul.addr %s417, 128
          %s422 = scalar_lea.hbm %s3, %s421
          %s423 = sshll.u32 %s413, 4
          %s424 = int_to_ptr.vmem [resolvable:$true] %s423
          %429 = dma.vmem_to_hbm [thread:$0]  %s424, 1024, %s422, %s410, 128, 128, 8
        $region36: #{tpu_custom_call.1} parent=31 // pred_fallthru
          _
      $region32: #{tpu_custom_call.1} parent=5 // pred_fallthru
        _
      %p430 = scmp.le.s32.totalorder 2, %s12
      // Predicated region
      $region37: #{tpu_custom_call.1} parent=5 // pred_check
        %p431 = pneg %p430
      $region38: #{tpu_custom_call.1} parent=5 // pred_check_branch
        %433 = sbr.rel (%p431) target = $region40
      $region39: #{tpu_custom_call.1} parent=5 // pred_region
        %s434 = ssub.s32 %s12, 2
        // Predicated region
        $region41: #{tpu_custom_call.1} parent=39 // pred_check
          %p435 = pneg %p109
        $region42: #{tpu_custom_call.1} parent=39 // pred_check_branch
          %437 = sbr.rel (%p435) target = $region44
        $region43: #{tpu_custom_call.1} parent=39 // pred_region
          %s438 = sand.u32 %s94, 1
          %s439 = scalar_lea.sflag [#allocation3], %s438
          %s440 = sand.u32 %s94, 1
          %s441 = smul.addr %s440, 64
          %s442 = scalar_lea.vmem [#allocation2], %s441
          %443 = dma.done %s439, 1024
        $region44: #{tpu_custom_call.1} parent=39 // pred_fallthru
          _
      $region40: #{tpu_custom_call.1} parent=5 // pred_fallthru
        _
    $region6: #{tpu_custom_call.1} parent=1 // loop_footer
      %s16 = sadd.s32 1, %s12
    $region7: #{tpu_custom_call.1} parent=1 // loop_footer_branch
      %11 = sbr.rel target = $region3
    $region8: #{tpu_custom_call.1} parent=1 // loop_exit
      _
    %444 = vsyncpa [#allocation3], 1
    %s445 = scalar_lea.sflag [#allocation3], 1
    %446 = vsyncpa %s445, 1

</llo_original>
